<compile_context>
chip_gen: v7x
topology: tpu7x:2x2x1
jax: 0.10.0
libtpu: 0.0.40
codegen_flags: <defaults>
</compile_context>

<pallas_src>
import jax
import jax.numpy as jnp
from jax import lax
from jax.experimental import pallas as pl
from jax.experimental.pallas import tpu as pltpu


def _mlp_kernel(x_ref, w1_ref, b1_ref, w2_ref, b2_ref, o_ref):
    # x_ref: (tile_b, item_dim); torch-layout weights: w1 (hidden, item_dim),
    # w2 (out, hidden); f32 row biases: b1 (1, hidden), b2 (1, out).
    x = x_ref[...].astype(w1_ref.dtype)                         # single cast (no-op f32)
    # (tile_b, item_dim) x (hidden, item_dim) contracting the shared last axis ->
    # (tile_b, hidden).  dot_general lets Mosaic fold the contraction orientation into
    # MXU operand staging instead of materialising an explicit transpose; f32 accum.
    h = lax.dot_general(x, w1_ref[...],
                        dimension_numbers=(((1,), (1,)), ((), ())),
                        preferred_element_type=jnp.float32)
    h = jnp.maximum(h + b1_ref[...], 0.0)                       # f32 bias + ReLU (VPU)
    o = lax.dot_general(h.astype(w2_ref.dtype), w2_ref[...],
                        dimension_numbers=(((1,), (1,)), ((), ())),
                        preferred_element_type=jnp.float32)     # (tile_b, out)
    o_ref[...] = (o + b2_ref[...]).astype(o_ref.dtype)          # row-major store


def prepare_params(params, compute_dtype=None):
    """Hoist per-call weight prep out of the forward path (call once at init).

    Keeps torch (out, in) weight layout (no transposes ever), optionally casts the
    matmul weights once to a narrower MXU dtype, and keeps biases in f32 as
    broadcastable row vectors.
    """
    w_dtype = compute_dtype if compute_dtype is not None else params["w1"].dtype
    hidden_dim = params["w1"].shape[0]
    out_dim = params["w2"].shape[0]
    return {
        "w1": params["w1"].astype(w_dtype),                          # (hidden, item_dim)
        "w2": params["w2"].astype(w_dtype),                          # (out, hidden)
        "b1": params["b1"].reshape(1, hidden_dim).astype(jnp.float32),
        "b2": params["b2"].reshape(1, out_dim).astype(jnp.float32),
    }


_TILE_CAP_CACHE = None


def _tile_cap():
    """Per-generation batch-tile cap (driven by VMEM capacity)."""
    global _TILE_CAP_CACHE
    if _TILE_CAP_CACHE is None:
        cap = 2048                                   # safe for v7x's 64 MiB VMEM / TC
        try:
            info = pltpu.get_tpu_info()
            vmem = getattr(info, "vmem_capacity_bytes", 0) or 0
            if vmem >= 100 * 1024 * 1024:            # v5e / v6e: 128 MiB VMEM
                cap = 4096
        except Exception:
            pass                                     # unknown generation: stay conservative
        _TILE_CAP_CACHE = cap
    return _TILE_CAP_CACHE


def _pick_tile_b(batch, cap):
    if batch < 256:
        return batch                                 # single full-batch block
    # >= 2 grid steps (both TensorCores on v7x), multiple of 128, per-generation cap.
    return min(cap, 128 * pl.cdiv(batch, 256))


def _padded_bytes(shape, dtype):
    """VMEM footprint of a block after (sublane, lane) padding."""
    d = jnp.dtype(dtype)
    sub = max(1, 32 // d.itemsize)                   # f32 -> 8, bf16 -> 16
    if len(shape) == 1:
        lead, rows, cols = 1, 1, shape[0]
    else:
        rows, cols = shape[-2], shape[-1]
        lead = 1
        for s in shape[:-2]:
            lead *= s
    rows_p = -(-rows // sub) * sub
    cols_p = -(-cols // 128) * 128
    return lead * rows_p * cols_p * d.itemsize


def _pallas_forward(x, w1, b1, w2, b2, *, tile_b, out_dtype, vmem_limit, cost,
                    single_buffer_weights):
    B, item_dim = x.shape
    hidden_dim = w1.shape[0]
    out_dim = w2.shape[0]
    num_tiles = pl.cdiv(B, tile_b)

    # Resident weights/biases: constant index_map; single-buffer them to recover VMEM
    # headroom (matters on v7x once hidden/item_dim grow).
    w_kwargs = {"pipeline_mode": pl.Buffered(1)} if single_buffer_weights else {}

    in_specs = [
        pl.BlockSpec((tile_b, item_dim), lambda i: (i, 0)),                 # x batch tile
        pl.BlockSpec((hidden_dim, item_dim), lambda i: (0, 0), **w_kwargs),  # W1 resident
        pl.BlockSpec((1, hidden_dim), lambda i: (0, 0), **w_kwargs),         # b1 row
        pl.BlockSpec((out_dim, hidden_dim), lambda i: (0, 0), **w_kwargs),   # W2 resident
        pl.BlockSpec((1, out_dim), lambda i: (0, 0), **w_kwargs),            # b2 row
    ]

    return pl.pallas_call(
        _mlp_kernel,
        out_shape=jax.ShapeDtypeStruct((B, out_dim), out_dtype),
        grid=(num_tiles,),
        in_specs=in_specs,
        out_specs=pl.BlockSpec((tile_b, out_dim), lambda i: (i, 0)),
        compiler_params=pltpu.CompilerParams(
            dimension_semantics=("parallel",),
            vmem_limit_bytes=vmem_limit,
        ),
        cost_estimate=cost,
    )(x, w1, b1, w2, b2)


def item_embedding_forward(item_input, prepared, *, tile_b=None):
    """item_input: (..., item_dim). `prepared` comes from prepare_params()."""
    w1, b1, w2, b2 = prepared["w1"], prepared["b1"], prepared["w2"], prepared["b2"]
    hidden_dim, item_dim = w1.shape
    out_dim = w2.shape[0]

    orig_shape = item_input.shape
    out_dtype = item_input.dtype
    # NOTE: no wrapper-side dtype cast of x -- if bf16 reads are wanted, pass bf16
    # item_input (or let an upstream producer emit bf16); the kernel casts post-DMA.
    x = item_input.reshape(-1, item_dim)              # flatten leading dims (glue)
    B = x.shape[0]

    if tile_b is None:
        tile_b = _pick_tile_b(B, _tile_cap())
    if not (tile_b == B or tile_b % 8 == 0):
        raise ValueError("tile_b must equal the flattened batch or be a multiple of 8")

    # VMEM budget with (sublane, lane) padding: double-buffered x/out tiles + resident
    # weights/biases (assume 2 copies for safety even when single-buffering) + headroom.
    tile_bytes = (_padded_bytes((tile_b, item_dim), x.dtype)
                  + _padded_bytes((tile_b, out_dim), out_dtype))
    weight_bytes_padded = sum(_padded_bytes(a.shape, a.dtype) for a in (w1, w2, b1, b2))
    vmem_limit = int(min(64 * 1024 * 1024,
                         max(8 * 1024 * 1024,
                             2 * tile_bytes + 2 * weight_bytes_padded + (2 << 20))))

    weight_bytes_raw = sum(int(a.size) * a.dtype.itemsize for a in (w1, w2, b1, b2))
    flops = 2 * B * (item_dim * hidden_dim + hidden_dim * out_dim)
    bytes_accessed = (B * item_dim * x.dtype.itemsize + weight_bytes_raw
                      + B * out_dim * jnp.dtype(out_dtype).itemsize)
    cost = pl.CostEstimate(flops=int(flops), transcendentals=0,
                           bytes_accessed=int(bytes_accessed))

    kwargs = dict(tile_b=tile_b, out_dtype=out_dtype, vmem_limit=vmem_limit, cost=cost)
    try:
        out = _pallas_forward(x, w1, b1, w2, b2, single_buffer_weights=True, **kwargs)
    except Exception:
        # pl.Buffered(1) / pipeline_mode not supported by this jax build: fall back to
        # default double-buffered resident weights (semantics unchanged).
        out = _pallas_forward(x, w1, b1, w2, b2, single_buffer_weights=False, **kwargs)

    return out.reshape(*orig_shape[:-1], out_dim)


def init_params(key, item_dim, hidden_dim, out_dim, dtype=jnp.float32):
    """Deterministic synthetic init mirroring nn.Linear shapes (uniform +-1/sqrt(fan_in))."""
    k1, k2, k3, k4 = jax.random.split(key, 4)
    bnd1 = 1.0 / jnp.sqrt(item_dim)
    bnd2 = 1.0 / jnp.sqrt(hidden_dim)
    return {
        "w1": jax.random.uniform(k1, (hidden_dim, item_dim), dtype, -bnd1, bnd1),
        "b1": jax.random.uniform(k2, (hidden_dim,), dtype, -bnd1, bnd1),
        "w2": jax.random.uniform(k3, (out_dim, hidden_dim), dtype, -bnd2, bnd2),
        "b2": jax.random.uniform(k4, (out_dim,), dtype, -bnd2, bnd2),
    }


if __name__ == "__main__":
    key = jax.random.PRNGKey(0)
    k_x, k_p, k_x2 = jax.random.split(key, 3)

    batch, item_dim, hidden_dim, out_dim = 8, 32, 64, 16
    x = jax.random.normal(k_x, (batch, item_dim), dtype=jnp.float32)
    params = init_params(k_p, item_dim, hidden_dim, out_dim)

    def ref_forward(xx):
        h = jnp.maximum(xx @ params["w1"].T + params["b1"], 0.0)
        return h @ params["w2"].T + params["b2"]

    # f32 path (exact semantics of the torch module).
    prepared = prepare_params(params)
    out = jax.block_until_ready(item_embedding_forward(x, prepared))
    assert out.shape == (batch, out_dim)
    assert jnp.allclose(out, ref_forward(x), atol=1e-5, rtol=1e-5)

    # Leading-dims glue: (2, 4, item_dim) -> (2, 4, out_dim).
    out3 = jax.block_until_ready(item_embedding_forward(x.reshape(2, 4, item_dim), prepared))
    assert out3.shape == (2, 4, out_dim)
    assert jnp.allclose(out3.reshape(batch, out_dim), ref_forward(x), atol=1e-5, rtol=1e-5)

    # Ragged batch: B not a multiple of tile_b -> partial final tile relies on Pallas
    # OOB masking (locks in the correctness concern from review).
    x_big = jax.random.normal(k_x2, (300, item_dim), dtype=jnp.float32)
    out_big = jax.block_until_ready(item_embedding_forward(x_big, prepared, tile_b=128))
    assert out_big.shape == (300, out_dim)
    assert jnp.allclose(out_big, ref_forward(x_big), atol=1e-4, rtol=1e-4)

    # bf16-weight path: bf16 MXU operands, f32 accumulation, x cast inside the kernel.
    prepared_bf16 = prepare_params(params, compute_dtype=jnp.bfloat16)
    out_bf16 = jax.block_until_ready(item_embedding_forward(x, prepared_bf16))
    assert out_bf16.shape == (batch, out_dim)
    assert jnp.allclose(out_bf16, ref_forward(x), atol=1e-1, rtol=1e-1)

    print("KERNEL_OK")
</pallas_src>

<mosaic_0001>
module attributes {stable_mosaic.version = 11 : i64} {
  func.func @_mlp_kernel(%arg0: i32, %arg1: memref<8x32xf32, #tpu.memory_space<vmem>>, %arg2: memref<64x32xf32, #tpu.memory_space<vmem>>, %arg3: memref<1x64xf32, #tpu.memory_space<vmem>>, %arg4: memref<16x64xf32, #tpu.memory_space<vmem>>, %arg5: memref<1x16xf32, #tpu.memory_space<vmem>>, %arg6: memref<8x16xf32, #tpu.memory_space<vmem>>) attributes {dimension_semantics = [#tpu.dimension_semantics<parallel>], iteration_bounds = array<i64: 1>, scalar_prefetch = 0 : i64, scratch_operands = 0 : i64, tpu.core_type = #tpu.core_type<tc>, window_params = [{transform_indices = @transform_0, window_bounds = array<i64: 8, 32>}, {pipeline_mode = #tpu.pipeline_mode<synchronous>, transform_indices = @transform_1, window_bounds = array<i64: 64, 32>}, {pipeline_mode = #tpu.pipeline_mode<synchronous>, transform_indices = @transform_2, window_bounds = array<i64: 1, 64>}, {pipeline_mode = #tpu.pipeline_mode<synchronous>, transform_indices = @transform_3, window_bounds = array<i64: 16, 64>}, {pipeline_mode = #tpu.pipeline_mode<synchronous>, transform_indices = @transform_4, window_bounds = array<i64: 1, 16>}, {transform_indices = @transform_5, window_bounds = array<i64: 8, 16>}]} {
    %c0 = arith.constant 0 : index
    %c0_0 = arith.constant 0 : index
    %0 = vector.load %arg1[%c0, %c0_0] : memref<8x32xf32, #tpu.memory_space<vmem>>, vector<8x32xf32>
    %c0_1 = arith.constant 0 : index
    %c0_2 = arith.constant 0 : index
    %1 = vector.load %arg2[%c0_1, %c0_2] : memref<64x32xf32, #tpu.memory_space<vmem>>, vector<64x32xf32>
    %cst = arith.constant dense<0.000000e+00> : vector<8x64xf32>
    %2 = tpu.matmul %0, %1, %cst {dimension_numbers = #tpu.dot_dimension_numbers<[1], [1], [0], [0], [0, 0, 1, 0], [], []>} : vector<8x32xf32>, vector<64x32xf32>, vector<8x64xf32> -> vector<8x64xf32>
    %c0_3 = arith.constant 0 : index
    %c0_4 = arith.constant 0 : index
    %3 = vector.load %arg3[%c0_3, %c0_4] : memref<1x64xf32, #tpu.memory_space<vmem>>, vector<1x64xf32>
    %4 = vector.broadcast %3 : vector<1x64xf32> to vector<8x64xf32>
    %5 = arith.addf %2, %4 : vector<8x64xf32>
    %cst_5 = arith.constant 0.000000e+00 : f32
    %6 = vector.broadcast %cst_5 : f32 to vector<8x64xf32>
    %7 = arith.maximumf %5, %6 : vector<8x64xf32>
    %c0_6 = arith.constant 0 : index
    %c0_7 = arith.constant 0 : index
    %8 = vector.load %arg4[%c0_6, %c0_7] : memref<16x64xf32, #tpu.memory_space<vmem>>, vector<16x64xf32>
    %cst_8 = arith.constant dense<0.000000e+00> : vector<8x16xf32>
    %9 = tpu.matmul %7, %8, %cst_8 {dimension_numbers = #tpu.dot_dimension_numbers<[1], [1], [0], [0], [0, 0, 1, 0], [], []>} : vector<8x64xf32>, vector<16x64xf32>, vector<8x16xf32> -> vector<8x16xf32>
    %c0_9 = arith.constant 0 : index
    %c0_10 = arith.constant 0 : index
    %10 = vector.load %arg5[%c0_9, %c0_10] : memref<1x16xf32, #tpu.memory_space<vmem>>, vector<1x16xf32>
    %11 = vector.broadcast %10 : vector<1x16xf32> to vector<8x16xf32>
    %12 = arith.addf %9, %11 : vector<8x16xf32>
    %c0_11 = arith.constant 0 : index
    %c0_12 = arith.constant 0 : index
    %13 = vector.load %arg6[%c0_11, %c0_12] : memref<8x16xf32, #tpu.memory_space<vmem>>, vector<8x16xf32>
    tpu.vector_store %arg6[%c0_11, %c0_12], %12 {strides = array<i32>} : memref<8x16xf32, #tpu.memory_space<vmem>>, vector<8x16xf32>,
    return
  }
  func.func @transform_0(%arg0: i32) -> (i32, i32) {
    %c0_i32 = arith.constant 0 : i32
    %c0_i32_0 = arith.constant 0 : i32
    return %arg0, %c0_i32 : i32, i32
  }
  func.func @transform_1(%arg0: i32) -> (i32, i32) {
    %c0_i32 = arith.constant 0 : i32
    %c0_i32_0 = arith.constant 0 : i32
    %c0_i32_1 = arith.constant 0 : i32
    return %c0_i32, %c0_i32_0 : i32, i32
  }
  func.func @transform_2(%arg0: i32) -> (i32, i32) {
    %c0_i32 = arith.constant 0 : i32
    %c0_i32_0 = arith.constant 0 : i32
    %c0_i32_1 = arith.constant 0 : i32
    return %c0_i32, %c0_i32_0 : i32, i32
  }
  func.func @transform_3(%arg0: i32) -> (i32, i32) {
    %c0_i32 = arith.constant 0 : i32
    %c0_i32_0 = arith.constant 0 : i32
    %c0_i32_1 = arith.constant 0 : i32
    return %c0_i32, %c0_i32_0 : i32, i32
  }
  func.func @transform_4(%arg0: i32) -> (i32, i32) {
    %c0_i32 = arith.constant 0 : i32
    %c0_i32_0 = arith.constant 0 : i32
    %c0_i32_1 = arith.constant 0 : i32
    return %c0_i32, %c0_i32_0 : i32, i32
  }
  func.func @transform_5(%arg0: i32) -> (i32, i32) {
    %c0_i32 = arith.constant 0 : i32
    %c0_i32_0 = arith.constant 0 : i32
    return %arg0, %c0_i32 : i32, i32
  }
}

module attributes {stable_mosaic.version = 11 : i64} {
  func.func @_mlp_kernel(%arg0: i32, %arg1: memref<8x32xf32, #tpu.memory_space<vmem>>, %arg2: memref<64x32xf32, #tpu.memory_space<vmem>>, %arg3: memref<1x64xf32, #tpu.memory_space<vmem>>, %arg4: memref<16x64xf32, #tpu.memory_space<vmem>>, %arg5: memref<1x16xf32, #tpu.memory_space<vmem>>, %arg6: memref<8x16xf32, #tpu.memory_space<vmem>>) attributes {dimension_semantics = [#tpu.dimension_semantics<parallel>], iteration_bounds = array<i64: 1>, scalar_prefetch = 0 : i64, scratch_operands = 0 : i64, tpu.core_type = #tpu.core_type<tc>, window_params = [{transform_indices = @transform_0, window_bounds = array<i64: 8, 32>}, {pipeline_mode = #tpu.pipeline_mode<synchronous>, transform_indices = @transform_1, window_bounds = array<i64: 64, 32>}, {pipeline_mode = #tpu.pipeline_mode<synchronous>, transform_indices = @transform_2, window_bounds = array<i64: 1, 64>}, {pipeline_mode = #tpu.pipeline_mode<synchronous>, transform_indices = @transform_3, window_bounds = array<i64: 16, 64>}, {pipeline_mode = #tpu.pipeline_mode<synchronous>, transform_indices = @transform_4, window_bounds = array<i64: 1, 16>}, {transform_indices = @transform_5, window_bounds = array<i64: 8, 16>}]} {
    %c0 = arith.constant 0 : index
    %c0_0 = arith.constant 0 : index
    %0 = vector.load %arg1[%c0, %c0_0] : memref<8x32xf32, #tpu.memory_space<vmem>>, vector<8x32xf32>
    %c0_1 = arith.constant 0 : index
    %c0_2 = arith.constant 0 : index
    %1 = vector.load %arg2[%c0_1, %c0_2] : memref<64x32xf32, #tpu.memory_space<vmem>>, vector<64x32xf32>
    %cst = arith.constant dense<0.000000e+00> : vector<8x64xf32>
    %2 = tpu.matmul %0, %1, %cst {dimension_numbers = #tpu.dot_dimension_numbers<[1], [1], [0], [0], [0, 0, 1, 0], [], []>} : vector<8x32xf32>, vector<64x32xf32>, vector<8x64xf32> -> vector<8x64xf32>
    %c0_3 = arith.constant 0 : index
    %c0_4 = arith.constant 0 : index
    %3 = vector.load %arg3[%c0_3, %c0_4] : memref<1x64xf32, #tpu.memory_space<vmem>>, vector<1x64xf32>
    %4 = vector.broadcast %3 : vector<1x64xf32> to vector<8x64xf32>
    %5 = arith.addf %2, %4 : vector<8x64xf32>
    %cst_5 = arith.constant 0.000000e+00 : f32
    %6 = vector.broadcast %cst_5 : f32 to vector<8x64xf32>
    %7 = arith.maximumf %5, %6 : vector<8x64xf32>
    %c0_6 = arith.constant 0 : index
    %c0_7 = arith.constant 0 : index
    %8 = vector.load %arg4[%c0_6, %c0_7] : memref<16x64xf32, #tpu.memory_space<vmem>>, vector<16x64xf32>
    %cst_8 = arith.constant dense<0.000000e+00> : vector<8x16xf32>
    %9 = tpu.matmul %7, %8, %cst_8 {dimension_numbers = #tpu.dot_dimension_numbers<[1], [1], [0], [0], [0, 0, 1, 0], [], []>} : vector<8x64xf32>, vector<16x64xf32>, vector<8x16xf32> -> vector<8x16xf32>
    %c0_9 = arith.constant 0 : index
    %c0_10 = arith.constant 0 : index
    %10 = vector.load %arg5[%c0_9, %c0_10] : memref<1x16xf32, #tpu.memory_space<vmem>>, vector<1x16xf32>
    %11 = vector.broadcast %10 : vector<1x16xf32> to vector<8x16xf32>
    %12 = arith.addf %9, %11 : vector<8x16xf32>
    %c0_11 = arith.constant 0 : index
    %c0_12 = arith.constant 0 : index
    %13 = vector.load %arg6[%c0_11, %c0_12] : memref<8x16xf32, #tpu.memory_space<vmem>>, vector<8x16xf32>
    tpu.vector_store %arg6[%c0_11, %c0_12], %12 {strides = array<i32>} : memref<8x16xf32, #tpu.memory_space<vmem>>, vector<8x16xf32>,
    return
  }
  func.func @transform_0(%arg0: i32) -> (i32, i32) {
    %c0_i32 = arith.constant 0 : i32
    %c0_i32_0 = arith.constant 0 : i32
    return %arg0, %c0_i32 : i32, i32
  }
  func.func @transform_1(%arg0: i32) -> (i32, i32) {
    %c0_i32 = arith.constant 0 : i32
    %c0_i32_0 = arith.constant 0 : i32
    %c0_i32_1 = arith.constant 0 : i32
    return %c0_i32, %c0_i32_0 : i32, i32
  }
  func.func @transform_2(%arg0: i32) -> (i32, i32) {
    %c0_i32 = arith.constant 0 : i32
    %c0_i32_0 = arith.constant 0 : i32
    %c0_i32_1 = arith.constant 0 : i32
    return %c0_i32, %c0_i32_0 : i32, i32
  }
  func.func @transform_3(%arg0: i32) -> (i32, i32) {
    %c0_i32 = arith.constant 0 : i32
    %c0_i32_0 = arith.constant 0 : i32
    %c0_i32_1 = arith.constant 0 : i32
    return %c0_i32, %c0_i32_0 : i32, i32
  }
  func.func @transform_4(%arg0: i32) -> (i32, i32) {
    %c0_i32 = arith.constant 0 : i32
    %c0_i32_0 = arith.constant 0 : i32
    %c0_i32_1 = arith.constant 0 : i32
    return %c0_i32, %c0_i32_0 : i32, i32
  }
  func.func @transform_5(%arg0: i32) -> (i32, i32) {
    %c0_i32 = arith.constant 0 : i32
    %c0_i32_0 = arith.constant 0 : i32
    return %arg0, %c0_i32 : i32, i32
  }
}

</mosaic_0001>

<llo_original>
// kernel: tpu_custom_call.1
$region0: #{tpu_custom_call.1}
  #allocation0 [shape = 'u32[]', space=smem, size = 0x4, offset = 0x4, fixed_abs, tag = 'smem constant byte address 0x4 - core index']
  #allocation1 [shape = 'u32[144,128]{1,0:T(1,128)}', space=vmem, size = 0x12000, scoped, tag = 'internal scratch']
  %s0 = inlined_call_operand.vmem [shape: f32[8,32], index: 0, kind: input, shape index: {}]
  %s1 = inlined_call_operand.vmem [shape: f32[64,32], index: 1, kind: input, shape index: {}]
  %s2 = inlined_call_operand.vmem [shape: f32[1,64], index: 2, kind: input, shape index: {}]
  %s3 = inlined_call_operand.vmem [shape: f32[16,64], index: 3, kind: input, shape index: {}]
  %s4 = inlined_call_operand.vmem [shape: f32[1,16], index: 4, kind: input, shape index: {}]
  %s5 = inlined_call_operand.hbm [shape: f32[8,16], index: 5, kind: output, shape index: {}]
  %s6 = sld [smem:[#allocation0]]
  $region30: #{tpu_custom_call.1} parent=0
    _
  %s8 = ssub.s32 1, %s6
  %s9 = scalar_select 0, %s8, %s6
  $region1: #{tpu_custom_call.1} parent=0
    #allocation2 [shape = 'u8[4096]{0}', space=vmem, size = 0x1000, scoped, tag = 'output window, operand 0, single buffered']
    #allocation3 [shape = 's32[1]{0}', space=sflag, size = 0x4, scoped, tag = 'scoped memory for tpu_custom_call.1']
    %10 = vsyncpa [#allocation3], 0
    // Predicated region
    $region2: #{tpu_custom_call.1} parent=1 // pred_check
      _
    $region3: #{tpu_custom_call.1} parent=1 // pred_check_branch
      %12 = sbr.rel (0) target = $region5
    $region4: #{tpu_custom_call.1} parent=1 // pred_region
      _
    $region5: #{tpu_custom_call.1} parent=1 // pred_fallthru
      _
    // Predicated region
    $region6: #{tpu_custom_call.1} parent=1 // pred_check
      _
    $region7: #{tpu_custom_call.1} parent=1 // pred_check_branch
      %14 = sbr.rel (0) target = $region9
    $region8: #{tpu_custom_call.1} parent=1 // pred_region
      _
    $region9: #{tpu_custom_call.1} parent=1 // pred_fallthru
      _
    // Predicated region
    $region10: #{tpu_custom_call.1} parent=1 // pred_check
      _
    $region11: #{tpu_custom_call.1} parent=1 // pred_check_branch
      %16 = sbr.rel (0) target = $region13
    $region12: #{tpu_custom_call.1} parent=1 // pred_region
      _
    $region13: #{tpu_custom_call.1} parent=1 // pred_fallthru
      _
    // Predicated region
    $region14: #{tpu_custom_call.1} parent=1 // pred_check
      _
    $region15: #{tpu_custom_call.1} parent=1 // pred_check_branch
      %18 = sbr.rel (0) target = $region17
    $region16: #{tpu_custom_call.1} parent=1 // pred_region
      _
    $region17: #{tpu_custom_call.1} parent=1 // pred_fallthru
      _
    // Predicated region
    $region18: #{tpu_custom_call.1} parent=1 // pred_check
      _
    $region19: #{tpu_custom_call.1} parent=1 // pred_check_branch
      %20 = sbr.rel (0) target = $region21
    $region20: #{tpu_custom_call.1} parent=1 // pred_region
      _
    $region21: #{tpu_custom_call.1} parent=1 // pred_fallthru
      _
    %v21 = vld [vmem:[%s0] sm:$0xff]
    %v22 = vld [vmem:[%s1] sm:$0xff]
    %v23 = vld [vmem:[%s1 + $0x8] sm:$0xff]
    %v24 = vld [vmem:[%s1 + $0x10] sm:$0xff]
    %v25 = vld [vmem:[%s1 + $0x18] sm:$0xff]
    %v26 = vld [vmem:[%s1 + $0x20] sm:$0xff]
    %v27 = vld [vmem:[%s1 + $0x28] sm:$0xff]
    %v28 = vld [vmem:[%s1 + $0x30] sm:$0xff]
    %v29 = vld [vmem:[%s1 + $0x38] sm:$0xff]
    %v30 = vld [vmem:[%s2] sm:$0x1]
    %v32 = vlaneseq
    %v33 = vshrl.u32 %v32, 7
    %v34 = vsub.s32 0, %v33
    %v35 = vrot.slane %v30, %v34
    %vm37 = vcmask 261120
    %v39 = vsel %vm37, %v21, 0
    %v42 = vsel %vm37, %v22, 0
    %v45 = vsel %vm37, %v23, 0
    %v48 = vsel %vm37, %v24, 0
    %v51 = vsel %vm37, %v25, 0
    %v54 = vsel %vm37, %v26, 0
    %v57 = vsel %vm37, %v27, 0
    %v60 = vsel %vm37, %v28, 0
    %v63 = vsel %vm37, %v29, 0
    %65 = vmatprep.subr.mxu0 0.0
    %66 = vmatpush1.xpose.msra.mxu0 %v42
    %67 = vmatprep.subr.mxu0 0.0
    %68 = vmatpush1.xpose.msra.mxu0 %v45
    %69 = vmatprep.subr.mxu0 0.0
    %70 = vmatpush1.xpose.msra.mxu0 %v48
    %71 = vmatprep.subr.mxu0 0.0
    %72 = vmatpush1.xpose.msra.mxu0 %v51
    %73 = vmatprep.subr.mxu0 0.0
    %74 = vmatpush1.xpose.msra.mxu0 %v54
    %75 = vmatprep.subr.mxu0 0.0
    %76 = vmatpush1.xpose.msra.mxu0 %v57
    %77 = vmatprep.subr.mxu0 0.0
    %78 = vmatpush1.xpose.msra.mxu0 %v60
    %79 = vmatprep.subr.mxu0 0.0
    %80 = vmatpush1.xpose.msra.mxu0 %v63
    %81 = vmatprep.subr.mxu0 0.0
    %82 = vmatpush1.xpose.msra.mxu0 0.0
    %83 = vmatprep.subr.mxu0 0.0
    %84 = vmatpush1.xpose.msra.mxu0 0.0
    %85 = vmatprep.subr.mxu0 0.0
    %86 = vmatpush1.xpose.msra.mxu0 0.0
    %87 = vmatprep.subr.mxu0 0.0
    %88 = vmatpush1.xpose.msra.mxu0 0.0
    %89 = vmatprep.subr.mxu0 0.0
    %90 = vmatpush1.xpose.msra.mxu0 0.0
    %91 = vmatprep.subr.mxu0 0.0
    %92 = vmatpush1.xpose.msra.mxu0 0.0
    %93 = vmatprep.subr.mxu0 0.0
    %94 = vmatpush1.xpose.msra.mxu0 0.0
    %95 = vmatprep.subr.mxu0 0.0
    %96 = vmatpush1.xpose.msra.mxu0 0.0
    %97 = vmatprep.subr.mxu0 0.0
    %98 = vmatpush1.xpose.msra.mxu0 0.0
    %99 = vmatprep.subr.mxu0 0.0
    %100 = vmatpush1.xpose.msra.mxu0 0.0
    %101 = vmatprep.subr.mxu0 0.0
    %102 = vmatpush1.xpose.msra.mxu0 0.0
    %103 = vmatprep.subr.mxu0 0.0
    %104 = vmatpush1.xpose.msra.mxu0 0.0
    %105 = vmatprep.subr.mxu0 0.0
    %106 = vmatpush1.xpose.msra.mxu0 0.0
    %107 = vmatprep.subr.mxu0 0.0
    %108 = vmatpush1.xpose.msra.mxu0 0.0
    %109 = vmatprep.subr.mxu0 0.0
    %110 = vmatpush1.xpose.msra.mxu0 0.0
    %111 = vmatprep.subr.mxu0 0.0
    %112 = vmatpush1.xpose.msra.mxu0 0.0
    %113 = vmatprep.subr.mxu0 0.0
    %114 = vmatpush1.xpose.msra.mxu0 0.0
    %115 = vmatprep.subr.mxu0 0.0
    %116 = vmatpush1.xpose.msra.mxu0 0.0
    %117 = vmatprep.subr.mxu0 0.0
    %118 = vmatpush1.xpose.msra.mxu0 0.0
    %119 = vmatprep.subr.mxu0 0.0
    %120 = vmatpush1.xpose.msra.mxu0 0.0
    %121 = vmatprep.subr.mxu0 0.0
    %122 = vmatpush1.xpose.msra.mxu0 0.0
    %123 = vmatprep.subr.mxu0 0.0
    %124 = vmatpush1.xpose.msra.mxu0 0.0
    %125 = vmatprep.subr.mxu0 0.0
    %126 = vmatpush1.xpose.msra.mxu0 0.0
    %127 = vmatprep.subr.mxu0 0.0
    %128 = vmatpush1.xpose.msra.mxu0 0.0
    %129 = vmatprep.mubr.f32.mxu0 0.0
    %130 = vmatmul.mubr.f32.gmra.mrb[0].mxu0 %v39
    %v131 = vpop.f32.mrb[0].mxu0
    %v132 = vadd.f32 %v35, %v131
    %v133 = vpop.f32.mrb[0].mxu0
    %134 = vdwg.mxu0
    %v135 = vmax.f32 %v132, 0.0
    %v136 = vld [vmem:[%s3] sm:$0xff]
    %v137 = vld [vmem:[%s3 + $0x8] sm:$0xff]
    %v138 = vld [vmem:[%s4] sm:$0x1]
    %v140 = vlaneseq
    %v141 = vshrl.u32 %v140, 7
    %v142 = vsub.s32 0, %v141
    %v143 = vrot.slane %v138, %v142
    %vm145 = vcmask 523264
    %v147 = vsel %vm145, %v135, 0
    %v150 = vsel %vm145, %v136, 0
    %v153 = vsel %vm145, %v137, 0
    %155 = vmatprep.subr.mxu0 0.0
    %156 = vmatpush1.xpose.msra.mxu0 %v150
    %157 = vmatprep.subr.mxu0 0.0
    %158 = vmatpush1.xpose.msra.mxu0 %v153
    %159 = vmatprep.subr.mxu0 0.0
    %160 = vmatpush1.xpose.msra.mxu0 0.0
    %161 = vmatprep.subr.mxu0 0.0
    %162 = vmatpush1.xpose.msra.mxu0 0.0
    %163 = vmatprep.subr.mxu0 0.0
    %164 = vmatpush1.xpose.msra.mxu0 0.0
    %165 = vmatprep.subr.mxu0 0.0
    %166 = vmatpush1.xpose.msra.mxu0 0.0
    %167 = vmatprep.subr.mxu0 0.0
    %168 = vmatpush1.xpose.msra.mxu0 0.0
    %169 = vmatprep.subr.mxu0 0.0
    %170 = vmatpush1.xpose.msra.mxu0 0.0
    %171 = vmatprep.subr.mxu0 0.0
    %172 = vmatpush1.xpose.msra.mxu0 0.0
    %173 = vmatprep.subr.mxu0 0.0
    %174 = vmatpush1.xpose.msra.mxu0 0.0
    %175 = vmatprep.subr.mxu0 0.0
    %176 = vmatpush1.xpose.msra.mxu0 0.0
    %177 = vmatprep.subr.mxu0 0.0
    %178 = vmatpush1.xpose.msra.mxu0 0.0
    %179 = vmatprep.subr.mxu0 0.0
    %180 = vmatpush1.xpose.msra.mxu0 0.0
    %181 = vmatprep.subr.mxu0 0.0
    %182 = vmatpush1.xpose.msra.mxu0 0.0
    %183 = vmatprep.subr.mxu0 0.0
    %184 = vmatpush1.xpose.msra.mxu0 0.0
    %185 = vmatprep.subr.mxu0 0.0
    %186 = vmatpush1.xpose.msra.mxu0 0.0
    %187 = vmatprep.subr.mxu0 0.0
    %188 = vmatpush1.xpose.msra.mxu0 0.0
    %189 = vmatprep.subr.mxu0 0.0
    %190 = vmatpush1.xpose.msra.mxu0 0.0
    %191 = vmatprep.subr.mxu0 0.0
    %192 = vmatpush1.xpose.msra.mxu0 0.0
    %193 = vmatprep.subr.mxu0 0.0
    %194 = vmatpush1.xpose.msra.mxu0 0.0
    %195 = vmatprep.subr.mxu0 0.0
    %196 = vmatpush1.xpose.msra.mxu0 0.0
    %197 = vmatprep.subr.mxu0 0.0
    %198 = vmatpush1.xpose.msra.mxu0 0.0
    %199 = vmatprep.subr.mxu0 0.0
    %200 = vmatpush1.xpose.msra.mxu0 0.0
    %201 = vmatprep.subr.mxu0 0.0
    %202 = vmatpush1.xpose.msra.mxu0 0.0
    %203 = vmatprep.subr.mxu0 0.0
    %204 = vmatpush1.xpose.msra.mxu0 0.0
    %205 = vmatprep.subr.mxu0 0.0
    %206 = vmatpush1.xpose.msra.mxu0 0.0
    %207 = vmatprep.subr.mxu0 0.0
    %208 = vmatpush1.xpose.msra.mxu0 0.0
    %209 = vmatprep.subr.mxu0 0.0
    %210 = vmatpush1.xpose.msra.mxu0 0.0
    %211 = vmatprep.subr.mxu0 0.0
    %212 = vmatpush1.xpose.msra.mxu0 0.0
    %213 = vmatprep.subr.mxu0 0.0
    %214 = vmatpush1.xpose.msra.mxu0 0.0
    %215 = vmatprep.subr.mxu0 0.0
    %216 = vmatpush1.xpose.msra.mxu0 0.0
    %217 = vmatprep.subr.mxu0 0.0
    %218 = vmatpush1.xpose.msra.mxu0 0.0
    %219 = vmatprep.mubr.f32.mxu0 0.0
    %220 = vmatmul.mubr.f32.gmra.mrb[0].mxu0 %v147
    %v221 = vpop.f32.mrb[0].mxu0
    %v222 = vadd.f32 %v143, %v221
    %v223 = vpop.f32.mrb[0].mxu0
    %224 = vdwg.mxu0
    %vm225 = vcmask 130048
    %226 = vst.msk [vmem:[#allocation2] sm:$0xff] %vm225, %v222
    // Predicated region
    $region22: #{tpu_custom_call.1} parent=1 // pred_check
      _
    $region23: #{tpu_custom_call.1} parent=1 // pred_check_branch
      %228 = sbr.rel (0) target = $region25
    $region24: #{tpu_custom_call.1} parent=1 // pred_region
      %s230 = ssub.s32 128, 128
      %231 = vsyncadd [#allocation3], %s230
      %s233 = sshll.u32 [#allocation2], 4
      %s234 = int_to_ptr.vmem [resolvable:$true] %s233
      %236 = dma.vmem_to_hbm [thread:$0]  %s234, 128, %s5, [#allocation3]
    $region25: #{tpu_custom_call.1} parent=1 // pred_fallthru
      _
    // Predicated region
    $region26: #{tpu_custom_call.1} parent=1 // pred_check
      _
    $region27: #{tpu_custom_call.1} parent=1 // pred_check_branch
      %238 = sbr.rel (0) target = $region29
    $region28: #{tpu_custom_call.1} parent=1 // pred_region
      %239 = dma.done [#allocation3], 128
    $region29: #{tpu_custom_call.1} parent=1 // pred_fallthru
      _
    %240 = vsyncpa [#allocation3], 1

// kernel: tpu_custom_call.1
$region0: #{tpu_custom_call.1}
  #allocation0 [shape = 'u32[]', space=smem, size = 0x4, offset = 0x4, fixed_abs, tag = 'smem constant byte address 0x4 - core index']
  #allocation1 [shape = 'u32[144,128]{1,0:T(1,128)}', space=vmem, size = 0x12000, scoped, tag = 'internal scratch']
  %s0 = inlined_call_operand.vmem [shape: f32[8,32], index: 0, kind: input, shape index: {}]
  %s1 = inlined_call_operand.vmem [shape: f32[64,32], index: 1, kind: input, shape index: {}]
  %s2 = inlined_call_operand.vmem [shape: f32[1,64], index: 2, kind: input, shape index: {}]
  %s3 = inlined_call_operand.vmem [shape: f32[16,64], index: 3, kind: input, shape index: {}]
  %s4 = inlined_call_operand.vmem [shape: f32[1,16], index: 4, kind: input, shape index: {}]
  %s5 = inlined_call_operand.hbm [shape: f32[8,16], index: 5, kind: output, shape index: {}]
  %s6 = sld [smem:[#allocation0]]
  $region30: #{tpu_custom_call.1} parent=0
    _
  %s8 = ssub.s32 1, %s6
  %s9 = scalar_select 0, %s8, %s6
  $region1: #{tpu_custom_call.1} parent=0
    #allocation2 [shape = 'u8[4096]{0}', space=vmem, size = 0x1000, scoped, tag = 'output window, operand 0, single buffered']
    #allocation3 [shape = 's32[1]{0}', space=sflag, size = 0x4, scoped, tag = 'scoped memory for tpu_custom_call.1']
    %10 = vsyncpa [#allocation3], 0
    // Predicated region
    $region2: #{tpu_custom_call.1} parent=1 // pred_check
      _
    $region3: #{tpu_custom_call.1} parent=1 // pred_check_branch
      %12 = sbr.rel (0) target = $region5
    $region4: #{tpu_custom_call.1} parent=1 // pred_region
      _
    $region5: #{tpu_custom_call.1} parent=1 // pred_fallthru
      _
    // Predicated region
    $region6: #{tpu_custom_call.1} parent=1 // pred_check
      _
    $region7: #{tpu_custom_call.1} parent=1 // pred_check_branch
      %14 = sbr.rel (0) target = $region9
    $region8: #{tpu_custom_call.1} parent=1 // pred_region
      _
    $region9: #{tpu_custom_call.1} parent=1 // pred_fallthru
      _
    // Predicated region
    $region10: #{tpu_custom_call.1} parent=1 // pred_check
      _
    $region11: #{tpu_custom_call.1} parent=1 // pred_check_branch
      %16 = sbr.rel (0) target = $region13
    $region12: #{tpu_custom_call.1} parent=1 // pred_region
      _
    $region13: #{tpu_custom_call.1} parent=1 // pred_fallthru
      _
    // Predicated region
    $region14: #{tpu_custom_call.1} parent=1 // pred_check
      _
    $region15: #{tpu_custom_call.1} parent=1 // pred_check_branch
      %18 = sbr.rel (0) target = $region17
    $region16: #{tpu_custom_call.1} parent=1 // pred_region
      _
    $region17: #{tpu_custom_call.1} parent=1 // pred_fallthru
      _
    // Predicated region
    $region18: #{tpu_custom_call.1} parent=1 // pred_check
      _
    $region19: #{tpu_custom_call.1} parent=1 // pred_check_branch
      %20 = sbr.rel (0) target = $region21
    $region20: #{tpu_custom_call.1} parent=1 // pred_region
      _
    $region21: #{tpu_custom_call.1} parent=1 // pred_fallthru
      _
    %v21 = vld [vmem:[%s0] sm:$0xff]
    %v22 = vld [vmem:[%s1] sm:$0xff]
    %v23 = vld [vmem:[%s1 + $0x8] sm:$0xff]
    %v24 = vld [vmem:[%s1 + $0x10] sm:$0xff]
    %v25 = vld [vmem:[%s1 + $0x18] sm:$0xff]
    %v26 = vld [vmem:[%s1 + $0x20] sm:$0xff]
    %v27 = vld [vmem:[%s1 + $0x28] sm:$0xff]
    %v28 = vld [vmem:[%s1 + $0x30] sm:$0xff]
    %v29 = vld [vmem:[%s1 + $0x38] sm:$0xff]
    %v30 = vld [vmem:[%s2] sm:$0x1]
    %v32 = vlaneseq
    %v33 = vshrl.u32 %v32, 7
    %v34 = vsub.s32 0, %v33
    %v35 = vrot.slane %v30, %v34
    %vm37 = vcmask 261120
    %v39 = vsel %vm37, %v21, 0
    %v42 = vsel %vm37, %v22, 0
    %v45 = vsel %vm37, %v23, 0
    %v48 = vsel %vm37, %v24, 0
    %v51 = vsel %vm37, %v25, 0
    %v54 = vsel %vm37, %v26, 0
    %v57 = vsel %vm37, %v27, 0
    %v60 = vsel %vm37, %v28, 0
    %v63 = vsel %vm37, %v29, 0
    %65 = vmatprep.subr.mxu0 0.0
    %66 = vmatpush1.xpose.msra.mxu0 %v42
    %67 = vmatprep.subr.mxu0 0.0
    %68 = vmatpush1.xpose.msra.mxu0 %v45
    %69 = vmatprep.subr.mxu0 0.0
    %70 = vmatpush1.xpose.msra.mxu0 %v48
    %71 = vmatprep.subr.mxu0 0.0
    %72 = vmatpush1.xpose.msra.mxu0 %v51
    %73 = vmatprep.subr.mxu0 0.0
    %74 = vmatpush1.xpose.msra.mxu0 %v54
    %75 = vmatprep.subr.mxu0 0.0
    %76 = vmatpush1.xpose.msra.mxu0 %v57
    %77 = vmatprep.subr.mxu0 0.0
    %78 = vmatpush1.xpose.msra.mxu0 %v60
    %79 = vmatprep.subr.mxu0 0.0
    %80 = vmatpush1.xpose.msra.mxu0 %v63
    %81 = vmatprep.subr.mxu0 0.0
    %82 = vmatpush1.xpose.msra.mxu0 0.0
    %83 = vmatprep.subr.mxu0 0.0
    %84 = vmatpush1.xpose.msra.mxu0 0.0
    %85 = vmatprep.subr.mxu0 0.0
    %86 = vmatpush1.xpose.msra.mxu0 0.0
    %87 = vmatprep.subr.mxu0 0.0
    %88 = vmatpush1.xpose.msra.mxu0 0.0
    %89 = vmatprep.subr.mxu0 0.0
    %90 = vmatpush1.xpose.msra.mxu0 0.0
    %91 = vmatprep.subr.mxu0 0.0
    %92 = vmatpush1.xpose.msra.mxu0 0.0
    %93 = vmatprep.subr.mxu0 0.0
    %94 = vmatpush1.xpose.msra.mxu0 0.0
    %95 = vmatprep.subr.mxu0 0.0
    %96 = vmatpush1.xpose.msra.mxu0 0.0
    %97 = vmatprep.subr.mxu0 0.0
    %98 = vmatpush1.xpose.msra.mxu0 0.0
    %99 = vmatprep.subr.mxu0 0.0
    %100 = vmatpush1.xpose.msra.mxu0 0.0
    %101 = vmatprep.subr.mxu0 0.0
    %102 = vmatpush1.xpose.msra.mxu0 0.0
    %103 = vmatprep.subr.mxu0 0.0
    %104 = vmatpush1.xpose.msra.mxu0 0.0
    %105 = vmatprep.subr.mxu0 0.0
    %106 = vmatpush1.xpose.msra.mxu0 0.0
    %107 = vmatprep.subr.mxu0 0.0
    %108 = vmatpush1.xpose.msra.mxu0 0.0
    %109 = vmatprep.subr.mxu0 0.0
    %110 = vmatpush1.xpose.msra.mxu0 0.0
    %111 = vmatprep.subr.mxu0 0.0
    %112 = vmatpush1.xpose.msra.mxu0 0.0
    %113 = vmatprep.subr.mxu0 0.0
    %114 = vmatpush1.xpose.msra.mxu0 0.0
    %115 = vmatprep.subr.mxu0 0.0
    %116 = vmatpush1.xpose.msra.mxu0 0.0
    %117 = vmatprep.subr.mxu0 0.0
    %118 = vmatpush1.xpose.msra.mxu0 0.0
    %119 = vmatprep.subr.mxu0 0.0
    %120 = vmatpush1.xpose.msra.mxu0 0.0
    %121 = vmatprep.subr.mxu0 0.0
    %122 = vmatpush1.xpose.msra.mxu0 0.0
    %123 = vmatprep.subr.mxu0 0.0
    %124 = vmatpush1.xpose.msra.mxu0 0.0
    %125 = vmatprep.subr.mxu0 0.0
    %126 = vmatpush1.xpose.msra.mxu0 0.0
    %127 = vmatprep.subr.mxu0 0.0
    %128 = vmatpush1.xpose.msra.mxu0 0.0
    %129 = vmatprep.mubr.f32.mxu0 0.0
    %130 = vmatmul.mubr.f32.gmra.mrb[0].mxu0 %v39
    %v131 = vpop.f32.mrb[0].mxu0
    %v132 = vadd.f32 %v35, %v131
    %v133 = vpop.f32.mrb[0].mxu0
    %134 = vdwg.mxu0
    %v135 = vmax.f32 %v132, 0.0
    %v136 = vld [vmem:[%s3] sm:$0xff]
    %v137 = vld [vmem:[%s3 + $0x8] sm:$0xff]
    %v138 = vld [vmem:[%s4] sm:$0x1]
    %v140 = vlaneseq
    %v141 = vshrl.u32 %v140, 7
    %v142 = vsub.s32 0, %v141
    %v143 = vrot.slane %v138, %v142
    %vm145 = vcmask 523264
    %v147 = vsel %vm145, %v135, 0
    %v150 = vsel %vm145, %v136, 0
    %v153 = vsel %vm145, %v137, 0
    %155 = vmatprep.subr.mxu0 0.0
    %156 = vmatpush1.xpose.msra.mxu0 %v150
    %157 = vmatprep.subr.mxu0 0.0
    %158 = vmatpush1.xpose.msra.mxu0 %v153
    %159 = vmatprep.subr.mxu0 0.0
    %160 = vmatpush1.xpose.msra.mxu0 0.0
    %161 = vmatprep.subr.mxu0 0.0
    %162 = vmatpush1.xpose.msra.mxu0 0.0
    %163 = vmatprep.subr.mxu0 0.0
    %164 = vmatpush1.xpose.msra.mxu0 0.0
    %165 = vmatprep.subr.mxu0 0.0
    %166 = vmatpush1.xpose.msra.mxu0 0.0
    %167 = vmatprep.subr.mxu0 0.0
    %168 = vmatpush1.xpose.msra.mxu0 0.0
    %169 = vmatprep.subr.mxu0 0.0
    %170 = vmatpush1.xpose.msra.mxu0 0.0
    %171 = vmatprep.subr.mxu0 0.0
    %172 = vmatpush1.xpose.msra.mxu0 0.0
    %173 = vmatprep.subr.mxu0 0.0
    %174 = vmatpush1.xpose.msra.mxu0 0.0
    %175 = vmatprep.subr.mxu0 0.0
    %176 = vmatpush1.xpose.msra.mxu0 0.0
    %177 = vmatprep.subr.mxu0 0.0
    %178 = vmatpush1.xpose.msra.mxu0 0.0
    %179 = vmatprep.subr.mxu0 0.0
    %180 = vmatpush1.xpose.msra.mxu0 0.0
    %181 = vmatprep.subr.mxu0 0.0
    %182 = vmatpush1.xpose.msra.mxu0 0.0
    %183 = vmatprep.subr.mxu0 0.0
    %184 = vmatpush1.xpose.msra.mxu0 0.0
    %185 = vmatprep.subr.mxu0 0.0
    %186 = vmatpush1.xpose.msra.mxu0 0.0
    %187 = vmatprep.subr.mxu0 0.0
    %188 = vmatpush1.xpose.msra.mxu0 0.0
    %189 = vmatprep.subr.mxu0 0.0
    %190 = vmatpush1.xpose.msra.mxu0 0.0
    %191 = vmatprep.subr.mxu0 0.0
    %192 = vmatpush1.xpose.msra.mxu0 0.0
    %193 = vmatprep.subr.mxu0 0.0
    %194 = vmatpush1.xpose.msra.mxu0 0.0
    %195 = vmatprep.subr.mxu0 0.0
    %196 = vmatpush1.xpose.msra.mxu0 0.0
    %197 = vmatprep.subr.mxu0 0.0
    %198 = vmatpush1.xpose.msra.mxu0 0.0
    %199 = vmatprep.subr.mxu0 0.0
    %200 = vmatpush1.xpose.msra.mxu0 0.0
    %201 = vmatprep.subr.mxu0 0.0
    %202 = vmatpush1.xpose.msra.mxu0 0.0
    %203 = vmatprep.subr.mxu0 0.0
    %204 = vmatpush1.xpose.msra.mxu0 0.0
    %205 = vmatprep.subr.mxu0 0.0
    %206 = vmatpush1.xpose.msra.mxu0 0.0
    %207 = vmatprep.subr.mxu0 0.0
    %208 = vmatpush1.xpose.msra.mxu0 0.0
    %209 = vmatprep.subr.mxu0 0.0
    %210 = vmatpush1.xpose.msra.mxu0 0.0
    %211 = vmatprep.subr.mxu0 0.0
    %212 = vmatpush1.xpose.msra.mxu0 0.0
    %213 = vmatprep.subr.mxu0 0.0
    %214 = vmatpush1.xpose.msra.mxu0 0.0
    %215 = vmatprep.subr.mxu0 0.0
    %216 = vmatpush1.xpose.msra.mxu0 0.0
    %217 = vmatprep.subr.mxu0 0.0
    %218 = vmatpush1.xpose.msra.mxu0 0.0
    %219 = vmatprep.mubr.f32.mxu0 0.0
    %220 = vmatmul.mubr.f32.gmra.mrb[0].mxu0 %v147
    %v221 = vpop.f32.mrb[0].mxu0
    %v222 = vadd.f32 %v143, %v221
    %v223 = vpop.f32.mrb[0].mxu0
    %224 = vdwg.mxu0
    %vm225 = vcmask 130048
    %226 = vst.msk [vmem:[#allocation2] sm:$0xff] %vm225, %v222
    // Predicated region
    $region22: #{tpu_custom_call.1} parent=1 // pred_check
      _
    $region23: #{tpu_custom_call.1} parent=1 // pred_check_branch
      %228 = sbr.rel (0) target = $region25
    $region24: #{tpu_custom_call.1} parent=1 // pred_region
      %s230 = ssub.s32 128, 128
      %231 = vsyncadd [#allocation3], %s230
      %s233 = sshll.u32 [#allocation2], 4
      %s234 = int_to_ptr.vmem [resolvable:$true] %s233
      %236 = dma.vmem_to_hbm [thread:$0]  %s234, 128, %s5, [#allocation3]
    $region25: #{tpu_custom_call.1} parent=1 // pred_fallthru
      _
    // Predicated region
    $region26: #{tpu_custom_call.1} parent=1 // pred_check
      _
    $region27: #{tpu_custom_call.1} parent=1 // pred_check_branch
      %238 = sbr.rel (0) target = $region29
    $region28: #{tpu_custom_call.1} parent=1 // pred_region
      %239 = dma.done [#allocation3], 128
    $region29: #{tpu_custom_call.1} parent=1 // pred_fallthru
      _
    %240 = vsyncpa [#allocation3], 1

</llo_original>
